<compile_context>
chip_gen: v6e
topology: v6e:2x2x1
jax: 0.10.0
libtpu: 0.0.40
codegen_flags: <defaults>
</compile_context>

<pallas_src>
import jax
import jax.numpy as jnp
from jax.experimental import pallas as pl
from jax.experimental.pallas import tpu as pltpu

INPUT_SIZE = 2
HIDDEN_SIZE = 256
HIDDEN_SIZE2 = 128
OUTPUT_SIZE = 8  # len(actions)

LANE = 128
DEFAULT_BATCH_TILE = 2048  # lane-aligned; ~5 MiB VMEM footprint per grid step


def _round_up(x, m):
    return ((x + m - 1) // m) * m


def policy_kernel(x_ref, w1_ref, b1_ref, w2_ref, b2_ref, w3_ref, b3_ref, o_ref):
    # Feature-major tiles: x (2, TB), h1 (256, TB), h2 (128, TB), out (8, TB).
    x = x_ref[...]                                        # (2, TB)   f32
    w1 = w1_ref[...]                                      # (256, 2)  f32

    # ---- linear1 + ReLU: K=2 -> VPU outer product (no degenerate MXU matmul) ----
    h1 = (w1[:, 0:1] * x[0:1, :]
          + w1[:, 1:2] * x[1:2, :]
          + b1_ref[...])                                  # (256, TB) f32
    h1 = jnp.maximum(h1, 0.0)

    # ---- linear2 + ReLU: (128,256)@(256,TB) MXU matmul, bf16 operands, f32 acc ----
    h2 = jnp.dot(w2_ref[...], h1.astype(jnp.bfloat16),
                 preferred_element_type=jnp.float32) + b2_ref[...]
    h2 = jnp.maximum(h2, 0.0)                             # (128, TB) f32

    # ---- linear3 + softmax over feature axis (axis 0, size 8), all f32 ----
    logits = jnp.dot(w3_ref[...], h2.astype(jnp.bfloat16),
                     preferred_element_type=jnp.float32) + b3_ref[...]   # (8, TB)
    m = jnp.max(logits, axis=0, keepdims=True)
    e = jnp.exp(logits - m)
    inv = 1.0 / jnp.sum(e, axis=0, keepdims=True)         # exact: rows sum to 1
    o_ref[...] = e * inv                                  # (8, TB)   f32, lane-dense


def policy_forward(state, params, *, batch_tile=DEFAULT_BATCH_TILE):
    """state: (B, INPUT_SIZE) float32. Returns (B, OUTPUT_SIZE) softmax probs."""
    w1, b1, w2, b2, w3, b3 = params
    B = state.shape[0]

    batch_tile = max(LANE, _round_up(int(batch_tile), LANE))
    Bp = _round_up(max(B, 1), LANE)          # lane-aligned padded batch
    if Bp <= 4 * LANE:
        TB = Bp                              # small batch: single grid step
    else:
        # >= 2 steps so v7x's two TensorCores both get work; tile <= batch_tile.
        nsteps = max(2, pl.cdiv(Bp, batch_tile))
        TB = _round_up(pl.cdiv(Bp, nsteps), LANE)
    Bp = _round_up(Bp, TB)
    grid = (Bp // TB,)

    # Feature-major input; zero-pad the batch to Bp (padded columns produce finite
    # probabilities that are simply discarded).
    x_t = state.T
    if Bp != B:
        x_t = jnp.pad(x_t, ((0, 0), (0, Bp - B)))

    # MXU-layer weights live in bf16 (cast once here, not per block).
    w2b = w2.astype(jnp.bfloat16)
    w3b = w3.astype(jnp.bfloat16)

    resident = lambda i: (0, 0)   # same block every step -> stays resident in VMEM

    out_t = pl.pallas_call(
        policy_kernel,
        out_shape=jax.ShapeDtypeStruct((OUTPUT_SIZE, Bp), jnp.float32),
        grid=grid,
        in_specs=[
            pl.BlockSpec((INPUT_SIZE, TB), lambda i: (0, i)),        # x tile (lane-dense)
            pl.BlockSpec((HIDDEN_SIZE, INPUT_SIZE), resident),       # w1 (256, 2)   f32
            pl.BlockSpec((HIDDEN_SIZE, 1), resident),                # b1 (256, 1)   f32
            pl.BlockSpec((HIDDEN_SIZE2, HIDDEN_SIZE), resident),     # w2 (128, 256) bf16
            pl.BlockSpec((HIDDEN_SIZE2, 1), resident),               # b2 (128, 1)   f32
            pl.BlockSpec((OUTPUT_SIZE, HIDDEN_SIZE2), resident),     # w3 (8, 128)   bf16
            pl.BlockSpec((OUTPUT_SIZE, 1), resident),                # b3 (8, 1)     f32
        ],
        out_specs=pl.BlockSpec((OUTPUT_SIZE, TB), lambda i: (0, i)), # lane-dense output
        compiler_params=pltpu.CompilerParams(
            # Batch axis shards across v7x's 2 TensorCores; no-op on v5e/v6e.
            dimension_semantics=("parallel",),
            # vmem_limit_bytes intentionally left at the default: footprint is a few MiB.
        ),
    )(x_t, w1, b1, w2b, b2, w3b, b3)

    return out_t.T[:B]


def init_params(key):
    """Deterministic init mimicking nn.Linear default (uniform +/- 1/sqrt(fan_in)).
    Weights are stored PyTorch-style as (out_features, in_features); biases as (out, 1)."""
    def linear(key, fan_in, fan_out):
        k_w, k_b = jax.random.split(key)
        bound = 1.0 / jnp.sqrt(float(fan_in))
        w = jax.random.uniform(k_w, (fan_out, fan_in), jnp.float32, -bound, bound)
        b = jax.random.uniform(k_b, (fan_out, 1), jnp.float32, -bound, bound)
        return w, b

    k1, k2, k3 = jax.random.split(key, 3)
    w1, b1 = linear(k1, INPUT_SIZE, HIDDEN_SIZE)
    w2, b2 = linear(k2, HIDDEN_SIZE, HIDDEN_SIZE2)
    w3, b3 = linear(k3, HIDDEN_SIZE2, OUTPUT_SIZE)
    return (w1, b1, w2, b2, w3, b3)


def policy_ref(state, params):
    """Pure-JAX f32 reference for correctness checking (row-major math)."""
    w1, b1, w2, b2, w3, b3 = params
    h1 = jnp.maximum(state @ w1.T + b1.T, 0.0)
    h2 = jnp.maximum(h1 @ w2.T + b2.T, 0.0)
    return jax.nn.softmax(h2 @ w3.T + b3.T, axis=-1)


if __name__ == "__main__":
    key = jax.random.PRNGKey(0)
    k_params, k_state1, k_state2 = jax.random.split(key, 3)
    params = init_params(k_params)

    # Case 1: small batch -> single lane-aligned grid step.
    batch = 8
    state = jax.random.normal(k_state1, (batch, INPUT_SIZE), jnp.float32)
    out = jax.block_until_ready(policy_forward(state, params))
    ref = policy_ref(state, params)
    assert out.shape == (batch, OUTPUT_SIZE)
    assert bool(jnp.all(jnp.isfinite(out)))
    # Exact-divide softmax: rows sum to 1 to f32 accuracy.
    assert jnp.allclose(jnp.sum(out, axis=-1), 1.0, atol=1e-3)
    # bf16 MXU operands -> compare to f32 reference with an appropriate tolerance.
    assert jnp.allclose(out, ref, atol=2e-2, rtol=2e-2)

    # Case 2: batch not divisible by the tile -> padding + multi-step grid
    # (also exercises the >=2-step path used for v7x megacore sharding).
    batch2 = 700
    state2 = jax.random.normal(k_state2, (batch2, INPUT_SIZE), jnp.float32)
    out2 = jax.block_until_ready(policy_forward(state2, params, batch_tile=256))
    ref2 = policy_ref(state2, params)
    assert out2.shape == (batch2, OUTPUT_SIZE)
    assert jnp.allclose(jnp.sum(out2, axis=-1), 1.0, atol=1e-3)
    assert jnp.allclose(out2, ref2, atol=2e-2, rtol=2e-2)

    print("KERNEL_OK")
</pallas_src>

<mosaic_0001>
module attributes {stable_mosaic.version = 11 : i64} {
  func.func @policy_kernel(%arg0: i32, %arg1: memref<2x128xf32, #tpu.memory_space<vmem>>, %arg2: memref<256x2xf32, #tpu.memory_space<vmem>>, %arg3: memref<256x1xf32, #tpu.memory_space<vmem>>, %arg4: memref<128x256xbf16, #tpu.memory_space<vmem>>, %arg5: memref<128x1xf32, #tpu.memory_space<vmem>>, %arg6: memref<8x128xbf16, #tpu.memory_space<vmem>>, %arg7: memref<8x1xf32, #tpu.memory_space<vmem>>, %arg8: memref<8x128xf32, #tpu.memory_space<vmem>>) attributes {dimension_semantics = [#tpu.dimension_semantics<parallel>], iteration_bounds = array<i64: 1>, scalar_prefetch = 0 : i64, scratch_operands = 0 : i64, tpu.core_type = #tpu.core_type<tc>, window_params = [{transform_indices = @transform_0, window_bounds = array<i64: 2, 128>}, {pipeline_mode = #tpu.pipeline_mode<synchronous>, transform_indices = @transform_1, window_bounds = array<i64: 256, 2>}, {pipeline_mode = #tpu.pipeline_mode<synchronous>, transform_indices = @transform_2, window_bounds = array<i64: 256, 1>}, {pipeline_mode = #tpu.pipeline_mode<synchronous>, transform_indices = @transform_3, window_bounds = array<i64: 128, 256>}, {pipeline_mode = #tpu.pipeline_mode<synchronous>, transform_indices = @transform_4, window_bounds = array<i64: 128, 1>}, {pipeline_mode = #tpu.pipeline_mode<synchronous>, transform_indices = @transform_5, window_bounds = array<i64: 8, 128>}, {pipeline_mode = #tpu.pipeline_mode<synchronous>, transform_indices = @transform_6, window_bounds = array<i64: 8, 1>}, {transform_indices = @transform_7, window_bounds = array<i64: 8, 128>}]} {
    %c0 = arith.constant 0 : index
    %c0_0 = arith.constant 0 : index
    %0 = vector.load %arg1[%c0, %c0_0] : memref<2x128xf32, #tpu.memory_space<vmem>>, vector<2x128xf32>
    %c0_1 = arith.constant 0 : index
    %c0_2 = arith.constant 0 : index
    %1 = vector.load %arg2[%c0_1, %c0_2] : memref<256x2xf32, #tpu.memory_space<vmem>>, vector<256x2xf32>
    %2 = vector.extract_strided_slice %1 {offsets = [0, 0], sizes = [256, 1], strides = [1, 1]} : vector<256x2xf32> to vector<256x1xf32>
    %3 = vector.extract_strided_slice %0 {offsets = [0, 0], sizes = [1, 128], strides = [1, 1]} : vector<2x128xf32> to vector<1x128xf32>
    %4 = vector.broadcast %2 : vector<256x1xf32> to vector<256x128xf32>
    %5 = vector.broadcast %3 : vector<1x128xf32> to vector<256x128xf32>
    %6 = arith.mulf %4, %5 : vector<256x128xf32>
    %7 = vector.extract_strided_slice %1 {offsets = [0, 1], sizes = [256, 1], strides = [1, 1]} : vector<256x2xf32> to vector<256x1xf32>
    %8 = vector.extract_strided_slice %0 {offsets = [1, 0], sizes = [1, 128], strides = [1, 1]} : vector<2x128xf32> to vector<1x128xf32>
    %9 = vector.broadcast %7 : vector<256x1xf32> to vector<256x128xf32>
    %10 = vector.broadcast %8 : vector<1x128xf32> to vector<256x128xf32>
    %11 = arith.mulf %9, %10 : vector<256x128xf32>
    %12 = arith.addf %6, %11 : vector<256x128xf32>
    %c0_3 = arith.constant 0 : index
    %c0_4 = arith.constant 0 : index
    %13 = vector.load %arg3[%c0_3, %c0_4] : memref<256x1xf32, #tpu.memory_space<vmem>>, vector<256x1xf32>
    %14 = vector.broadcast %13 : vector<256x1xf32> to vector<256x128xf32>
    %15 = arith.addf %12, %14 : vector<256x128xf32>
    %cst = arith.constant 0.000000e+00 : f32
    %16 = vector.broadcast %cst : f32 to vector<256x128xf32>
    %17 = arith.maximumf %15, %16 : vector<256x128xf32>
    %c0_5 = arith.constant 0 : index
    %c0_6 = arith.constant 0 : index
    %18 = vector.load %arg4[%c0_5, %c0_6] : memref<128x256xbf16, #tpu.memory_space<vmem>>, vector<128x256xbf16>
    %19 = arith.truncf %17 : vector<256x128xf32> to vector<256x128xbf16>
    %cst_7 = arith.constant dense<0.000000e+00> : vector<128x128xf32>
    %20 = tpu.matmul %18, %19, %cst_7 {dimension_numbers = #tpu.dot_dimension_numbers<[1], [0], [0], [1], [0, 0, 1, 1], [], []>} : vector<128x256xbf16>, vector<256x128xbf16>, vector<128x128xf32> -> vector<128x128xf32>
    %c0_8 = arith.constant 0 : index
    %c0_9 = arith.constant 0 : index
    %21 = vector.load %arg5[%c0_8, %c0_9] : memref<128x1xf32, #tpu.memory_space<vmem>>, vector<128x1xf32>
    %22 = vector.broadcast %21 : vector<128x1xf32> to vector<128x128xf32>
    %23 = arith.addf %20, %22 : vector<128x128xf32>
    %cst_10 = arith.constant 0.000000e+00 : f32
    %24 = vector.broadcast %cst_10 : f32 to vector<128x128xf32>
    %25 = arith.maximumf %23, %24 : vector<128x128xf32>
    %c0_11 = arith.constant 0 : index
    %c0_12 = arith.constant 0 : index
    %26 = vector.load %arg6[%c0_11, %c0_12] : memref<8x128xbf16, #tpu.memory_space<vmem>>, vector<8x128xbf16>
    %27 = arith.truncf %25 : vector<128x128xf32> to vector<128x128xbf16>
    %cst_13 = arith.constant dense<0.000000e+00> : vector<8x128xf32>
    %28 = tpu.matmul %26, %27, %cst_13 {dimension_numbers = #tpu.dot_dimension_numbers<[1], [0], [0], [1], [0, 0, 1, 1], [], []>} : vector<8x128xbf16>, vector<128x128xbf16>, vector<8x128xf32> -> vector<8x128xf32>
    %c0_14 = arith.constant 0 : index
    %c0_15 = arith.constant 0 : index
    %29 = vector.load %arg7[%c0_14, %c0_15] : memref<8x1xf32, #tpu.memory_space<vmem>>, vector<8x1xf32>
    %30 = vector.broadcast %29 : vector<8x1xf32> to vector<8x128xf32>
    %31 = arith.addf %28, %30 : vector<8x128xf32>
    %cst_16 = arith.constant dense<0xFF800000> : vector<128xf32>
    %32 = vector.multi_reduction <maximumf>, %31, %cst_16 [0] : vector<8x128xf32> to vector<128xf32>
    %33 = vector.shape_cast %32 : vector<128xf32> to vector<1x128xf32>
    %34 = vector.broadcast %33 : vector<1x128xf32> to vector<8x128xf32>
    %35 = arith.subf %31, %34 : vector<8x128xf32>
    %36 = math.exp %35 : vector<8x128xf32>
    %cst_17 = arith.constant dense<0.000000e+00> : vector<128xf32>
    %37 = vector.multi_reduction <add>, %36, %cst_17 [0] : vector<8x128xf32> to vector<128xf32>
    %38 = vector.shape_cast %37 : vector<128xf32> to vector<1x128xf32>
    %cst_18 = arith.constant 1.000000e+00 : f32
    %39 = vector.broadcast %cst_18 : f32 to vector<1x128xf32>
    %40 = arith.divf %39, %38 : vector<1x128xf32>
    %41 = vector.broadcast %40 : vector<1x128xf32> to vector<8x128xf32>
    %42 = arith.mulf %36, %41 : vector<8x128xf32>
    %c0_19 = arith.constant 0 : index
    %c0_20 = arith.constant 0 : index
    %43 = vector.load %arg8[%c0_19, %c0_20] : memref<8x128xf32, #tpu.memory_space<vmem>>, vector<8x128xf32>
    tpu.vector_store %arg8[%c0_19, %c0_20], %42 {strides = array<i32>} : memref<8x128xf32, #tpu.memory_space<vmem>>, vector<8x128xf32>,
    return
  }
  func.func @transform_0(%arg0: i32) -> (i32, i32) {
    %c0_i32 = arith.constant 0 : i32
    %c0_i32_0 = arith.constant 0 : i32
    return %c0_i32, %arg0 : i32, i32
  }
  func.func @transform_1(%arg0: i32) -> (i32, i32) {
    %c0_i32 = arith.constant 0 : i32
    %c0_i32_0 = arith.constant 0 : i32
    %c0_i32_1 = arith.constant 0 : i32
    return %c0_i32, %c0_i32_0 : i32, i32
  }
  func.func @transform_2(%arg0: i32) -> (i32, i32) {
    %c0_i32 = arith.constant 0 : i32
    %c0_i32_0 = arith.constant 0 : i32
    %c0_i32_1 = arith.constant 0 : i32
    return %c0_i32, %c0_i32_0 : i32, i32
  }
  func.func @transform_3(%arg0: i32) -> (i32, i32) {
    %c0_i32 = arith.constant 0 : i32
    %c0_i32_0 = arith.constant 0 : i32
    %c0_i32_1 = arith.constant 0 : i32
    return %c0_i32, %c0_i32_0 : i32, i32
  }
  func.func @transform_4(%arg0: i32) -> (i32, i32) {
    %c0_i32 = arith.constant 0 : i32
    %c0_i32_0 = arith.constant 0 : i32
    %c0_i32_1 = arith.constant 0 : i32
    return %c0_i32, %c0_i32_0 : i32, i32
  }
  func.func @transform_5(%arg0: i32) -> (i32, i32) {
    %c0_i32 = arith.constant 0 : i32
    %c0_i32_0 = arith.constant 0 : i32
    %c0_i32_1 = arith.constant 0 : i32
    return %c0_i32, %c0_i32_0 : i32, i32
  }
  func.func @transform_6(%arg0: i32) -> (i32, i32) {
    %c0_i32 = arith.constant 0 : i32
    %c0_i32_0 = arith.constant 0 : i32
    %c0_i32_1 = arith.constant 0 : i32
    return %c0_i32, %c0_i32_0 : i32, i32
  }
  func.func @transform_7(%arg0: i32) -> (i32, i32) {
    %c0_i32 = arith.constant 0 : i32
    %c0_i32_0 = arith.constant 0 : i32
    return %c0_i32, %arg0 : i32, i32
  }
}

</mosaic_0001>

<llo_original>
// kernel: tpu_custom_call.1
$region0: #{tpu_custom_call.1}
  #allocation0 [shape = 'u32[]', space=smem, size = 0x4, offset = 0x4, fixed_abs, tag = 'smem constant byte address 0x4 - core index']
  #allocation1 [shape = 'u32[144,128]{1,0:T(1,128)}', space=vmem, size = 0x12000, scoped, tag = 'internal scratch']
  %s0 = inlined_call_operand.vmem [shape: f32[2,128], index: 0, kind: input, shape index: {}]
  %s1 = inlined_call_operand.vmem [shape: f32[256,2], index: 1, kind: input, shape index: {}]
  %s2 = inlined_call_operand.vmem [shape: f32[256,1], index: 2, kind: input, shape index: {}]
  %s3 = inlined_call_operand.vmem [shape: bf16[128,256], index: 3, kind: input, shape index: {}]
  %s4 = inlined_call_operand.vmem [shape: f32[128,1], index: 4, kind: input, shape index: {}]
  %s5 = inlined_call_operand.vmem [shape: bf16[8,128], index: 5, kind: input, shape index: {}]
  %s6 = inlined_call_operand.vmem [shape: f32[8,1], index: 6, kind: input, shape index: {}]
  %s7 = inlined_call_operand.hbm [shape: f32[8,128], index: 7, kind: output, shape index: {}]
  %s8 = sld [smem:[#allocation0]]
  $region38: #{tpu_custom_call.1} parent=0
    _
  %s10 = ssub.s32 1, %s8
  %s11 = scalar_select 0, %s10, %s8
  $region1: #{tpu_custom_call.1} parent=0
    #allocation2 [shape = 'u8[4096]{0}', space=vmem, size = 0x1000, scoped, tag = 'output window, operand 0, single buffered']
    #allocation3 [shape = 's32[1]{0}', space=sflag, size = 0x4, scoped, tag = 'scoped memory for tpu_custom_call.1']
    %12 = vsyncpa [#allocation3], 0
    // Predicated region
    $region2: #{tpu_custom_call.1} parent=1 // pred_check
      _
    $region3: #{tpu_custom_call.1} parent=1 // pred_check_branch
      %14 = sbr.rel (0) target = $region5
    $region4: #{tpu_custom_call.1} parent=1 // pred_region
      _
    $region5: #{tpu_custom_call.1} parent=1 // pred_fallthru
      _
    // Predicated region
    $region6: #{tpu_custom_call.1} parent=1 // pred_check
      _
    $region7: #{tpu_custom_call.1} parent=1 // pred_check_branch
      %16 = sbr.rel (0) target = $region9
    $region8: #{tpu_custom_call.1} parent=1 // pred_region
      _
    $region9: #{tpu_custom_call.1} parent=1 // pred_fallthru
      _
    // Predicated region
    $region10: #{tpu_custom_call.1} parent=1 // pred_check
      _
    $region11: #{tpu_custom_call.1} parent=1 // pred_check_branch
      %18 = sbr.rel (0) target = $region13
    $region12: #{tpu_custom_call.1} parent=1 // pred_region
      _
    $region13: #{tpu_custom_call.1} parent=1 // pred_fallthru
      _
    // Predicated region
    $region14: #{tpu_custom_call.1} parent=1 // pred_check
      _
    $region15: #{tpu_custom_call.1} parent=1 // pred_check_branch
      %20 = sbr.rel (0) target = $region17
    $region16: #{tpu_custom_call.1} parent=1 // pred_region
      _
    $region17: #{tpu_custom_call.1} parent=1 // pred_fallthru
      _
    // Predicated region
    $region18: #{tpu_custom_call.1} parent=1 // pred_check
      _
    $region19: #{tpu_custom_call.1} parent=1 // pred_check_branch
      %22 = sbr.rel (0) target = $region21
    $region20: #{tpu_custom_call.1} parent=1 // pred_region
      _
    $region21: #{tpu_custom_call.1} parent=1 // pred_fallthru
      _
    // Predicated region
    $region22: #{tpu_custom_call.1} parent=1 // pred_check
      _
    $region23: #{tpu_custom_call.1} parent=1 // pred_check_branch
      %24 = sbr.rel (0) target = $region25
    $region24: #{tpu_custom_call.1} parent=1 // pred_region
      _
    $region25: #{tpu_custom_call.1} parent=1 // pred_fallthru
      _
    // Predicated region
    $region26: #{tpu_custom_call.1} parent=1 // pred_check
      _
    $region27: #{tpu_custom_call.1} parent=1 // pred_check_branch
      %26 = sbr.rel (0) target = $region29
    $region28: #{tpu_custom_call.1} parent=1 // pred_region
      _
    $region29: #{tpu_custom_call.1} parent=1 // pred_fallthru
      _
    %v28 = vld [vmem:[%s0] sm:$0x3]
    %v29 = vld [vmem:[%s1] sm:$0xff]
    %v30 = vld [vmem:[%s1 + $0x8] sm:$0xff]
    %v31 = vld [vmem:[%s1 + $0x10] sm:$0xff]
    %v32 = vld [vmem:[%s1 + $0x18] sm:$0xff]
    %v33 = vld [vmem:[%s1 + $0x20] sm:$0xff]
    %v34 = vld [vmem:[%s1 + $0x28] sm:$0xff]
    %v35 = vld [vmem:[%s1 + $0x30] sm:$0xff]
    %v36 = vld [vmem:[%s1 + $0x38] sm:$0xff]
    %v37 = vld [vmem:[%s1 + $0x40] sm:$0xff]
    %v38 = vld [vmem:[%s1 + $0x48] sm:$0xff]
    %v39 = vld [vmem:[%s1 + $0x50] sm:$0xff]
    %v40 = vld [vmem:[%s1 + $0x58] sm:$0xff]
    %v41 = vld [vmem:[%s1 + $0x60] sm:$0xff]
    %v42 = vld [vmem:[%s1 + $0x68] sm:$0xff]
    %v43 = vld [vmem:[%s1 + $0x70] sm:$0xff]
    %v44 = vld [vmem:[%s1 + $0x78] sm:$0xff]
    %v45 = vld [vmem:[%s1 + $0x80] sm:$0xff]
    %v46 = vld [vmem:[%s1 + $0x88] sm:$0xff]
    %v47 = vld [vmem:[%s1 + $0x90] sm:$0xff]
    %v48 = vld [vmem:[%s1 + $0x98] sm:$0xff]
    %v49 = vld [vmem:[%s1 + $0xa0] sm:$0xff]
    %v50 = vld [vmem:[%s1 + $0xa8] sm:$0xff]
    %v51 = vld [vmem:[%s1 + $0xb0] sm:$0xff]
    %v52 = vld [vmem:[%s1 + $0xb8] sm:$0xff]
    %v53 = vld [vmem:[%s1 + $0xc0] sm:$0xff]
    %v54 = vld [vmem:[%s1 + $0xc8] sm:$0xff]
    %v55 = vld [vmem:[%s1 + $0xd0] sm:$0xff]
    %v56 = vld [vmem:[%s1 + $0xd8] sm:$0xff]
    %v57 = vld [vmem:[%s1 + $0xe0] sm:$0xff]
    %v58 = vld [vmem:[%s1 + $0xe8] sm:$0xff]
    %v59 = vld [vmem:[%s1 + $0xf0] sm:$0xff]
    %v60 = vld [vmem:[%s1 + $0xf8] sm:$0xff]
    %62 = vset.pattern.permute.xlu0 0
    %63 = vperm.xlu0 %62, %v29
    %v64 = vpop.permute.xlu0 %63
    %67 = vset.pattern.permute.xlu0 0
    %68 = vperm.xlu0 %67, %v30
    %v69 = vpop.permute.xlu0 %68
    %72 = vset.pattern.permute.xlu0 0
    %73 = vperm.xlu0 %72, %v31
    %v74 = vpop.permute.xlu0 %73
    %77 = vset.pattern.permute.xlu0 0
    %78 = vperm.xlu0 %77, %v32
    %v79 = vpop.permute.xlu0 %78
    %82 = vset.pattern.permute.xlu0 0
    %83 = vperm.xlu0 %82, %v33
    %v84 = vpop.permute.xlu0 %83
    %87 = vset.pattern.permute.xlu0 0
    %88 = vperm.xlu0 %87, %v34
    %v89 = vpop.permute.xlu0 %88
    %92 = vset.pattern.permute.xlu0 0
    %93 = vperm.xlu0 %92, %v35
    %v94 = vpop.permute.xlu0 %93
    %97 = vset.pattern.permute.xlu0 0
    %98 = vperm.xlu0 %97, %v36
    %v99 = vpop.permute.xlu0 %98
    %102 = vset.pattern.permute.xlu0 0
    %103 = vperm.xlu0 %102, %v37
    %v104 = vpop.permute.xlu0 %103
    %107 = vset.pattern.permute.xlu0 0
    %108 = vperm.xlu0 %107, %v38
    %v109 = vpop.permute.xlu0 %108
    %112 = vset.pattern.permute.xlu0 0
    %113 = vperm.xlu0 %112, %v39
    %v114 = vpop.permute.xlu0 %113
    %117 = vset.pattern.permute.xlu0 0
    %118 = vperm.xlu0 %117, %v40
    %v119 = vpop.permute.xlu0 %118
    %122 = vset.pattern.permute.xlu0 0
    %123 = vperm.xlu0 %122, %v41
    %v124 = vpop.permute.xlu0 %123
    %127 = vset.pattern.permute.xlu0 0
    %128 = vperm.xlu0 %127, %v42
    %v129 = vpop.permute.xlu0 %128
    %132 = vset.pattern.permute.xlu0 0
    %133 = vperm.xlu0 %132, %v43
    %v134 = vpop.permute.xlu0 %133
    %137 = vset.pattern.permute.xlu0 0
    %138 = vperm.xlu0 %137, %v44
    %v139 = vpop.permute.xlu0 %138
    %142 = vset.pattern.permute.xlu0 0
    %143 = vperm.xlu0 %142, %v45
    %v144 = vpop.permute.xlu0 %143
    %147 = vset.pattern.permute.xlu0 0
    %148 = vperm.xlu0 %147, %v46
    %v149 = vpop.permute.xlu0 %148
    %152 = vset.pattern.permute.xlu0 0
    %153 = vperm.xlu0 %152, %v47
    %v154 = vpop.permute.xlu0 %153
    %157 = vset.pattern.permute.xlu0 0
    %158 = vperm.xlu0 %157, %v48
    %v159 = vpop.permute.xlu0 %158
    %162 = vset.pattern.permute.xlu0 0
    %163 = vperm.xlu0 %162, %v49
    %v164 = vpop.permute.xlu0 %163
    %167 = vset.pattern.permute.xlu0 0
    %168 = vperm.xlu0 %167, %v50
    %v169 = vpop.permute.xlu0 %168
    %172 = vset.pattern.permute.xlu0 0
    %173 = vperm.xlu0 %172, %v51
    %v174 = vpop.permute.xlu0 %173
    %177 = vset.pattern.permute.xlu0 0
    %178 = vperm.xlu0 %177, %v52
    %v179 = vpop.permute.xlu0 %178
    %182 = vset.pattern.permute.xlu0 0
    %183 = vperm.xlu0 %182, %v53
    %v184 = vpop.permute.xlu0 %183
    %187 = vset.pattern.permute.xlu0 0
    %188 = vperm.xlu0 %187, %v54
    %v189 = vpop.permute.xlu0 %188
    %192 = vset.pattern.permute.xlu0 0
    %193 = vperm.xlu0 %192, %v55
    %v194 = vpop.permute.xlu0 %193
    %197 = vset.pattern.permute.xlu0 0
    %198 = vperm.xlu0 %197, %v56
    %v199 = vpop.permute.xlu0 %198
    %202 = vset.pattern.permute.xlu0 0
    %203 = vperm.xlu0 %202, %v57
    %v204 = vpop.permute.xlu0 %203
    %207 = vset.pattern.permute.xlu0 0
    %208 = vperm.xlu0 %207, %v58
    %v209 = vpop.permute.xlu0 %208
    %212 = vset.pattern.permute.xlu0 0
    %213 = vperm.xlu0 %212, %v59
    %v214 = vpop.permute.xlu0 %213
    %217 = vset.pattern.permute.xlu0 0
    %218 = vperm.xlu0 %217, %v60
    %v219 = vpop.permute.xlu0 %218
    %v221 = vlaneseq
    %v222 = vshrl.u32 %v221, 7
    %v223 = vsub.s32 0, %v222
    %v224 = vrot.slane %v28, %v223
    %v225 = vmul.f32 %v64, %v224
    %v226 = vmul.f32 %v69, %v224
    %v227 = vmul.f32 %v74, %v224
    %v228 = vmul.f32 %v79, %v224
    %v229 = vmul.f32 %v84, %v224
    %v230 = vmul.f32 %v89, %v224
    %v231 = vmul.f32 %v94, %v224
    %v232 = vmul.f32 %v99, %v224
    %v233 = vmul.f32 %v104, %v224
    %v234 = vmul.f32 %v109, %v224
    %v235 = vmul.f32 %v114, %v224
    %v236 = vmul.f32 %v119, %v224
    %v237 = vmul.f32 %v124, %v224
    %v238 = vmul.f32 %v129, %v224
    %v239 = vmul.f32 %v134, %v224
    %v240 = vmul.f32 %v139, %v224
    %v241 = vmul.f32 %v144, %v224
    %v242 = vmul.f32 %v149, %v224
    %v243 = vmul.f32 %v154, %v224
    %v244 = vmul.f32 %v159, %v224
    %v245 = vmul.f32 %v164, %v224
    %v246 = vmul.f32 %v169, %v224
    %v247 = vmul.f32 %v174, %v224
    %v248 = vmul.f32 %v179, %v224
    %v249 = vmul.f32 %v184, %v224
    %v250 = vmul.f32 %v189, %v224
    %v251 = vmul.f32 %v194, %v224
    %v252 = vmul.f32 %v199, %v224
    %v253 = vmul.f32 %v204, %v224
    %v254 = vmul.f32 %v209, %v224
    %v255 = vmul.f32 %v214, %v224
    %v256 = vmul.f32 %v219, %v224
    %257 = vset.pattern.permute.xlu0 1
    %258 = vperm.xlu0 %257, %v29
    %v259 = vpop.permute.xlu0 %258
    %261 = vset.pattern.permute.xlu0 1
    %262 = vperm.xlu0 %261, %v30
    %v263 = vpop.permute.xlu0 %262
    %265 = vset.pattern.permute.xlu0 1
    %266 = vperm.xlu0 %265, %v31
    %v267 = vpop.permute.xlu0 %266
    %269 = vset.pattern.permute.xlu0 1
    %270 = vperm.xlu0 %269, %v32
    %v271 = vpop.permute.xlu0 %270
    %273 = vset.pattern.permute.xlu0 1
    %274 = vperm.xlu0 %273, %v33
    %v275 = vpop.permute.xlu0 %274
    %277 = vset.pattern.permute.xlu0 1
    %278 = vperm.xlu0 %277, %v34
    %v279 = vpop.permute.xlu0 %278
    %281 = vset.pattern.permute.xlu0 1
    %282 = vperm.xlu0 %281, %v35
    %v283 = vpop.permute.xlu0 %282
    %285 = vset.pattern.permute.xlu0 1
    %286 = vperm.xlu0 %285, %v36
    %v287 = vpop.permute.xlu0 %286
    %289 = vset.pattern.permute.xlu0 1
    %290 = vperm.xlu0 %289, %v37
    %v291 = vpop.permute.xlu0 %290
    %293 = vset.pattern.permute.xlu0 1
    %294 = vperm.xlu0 %293, %v38
    %v295 = vpop.permute.xlu0 %294
    %297 = vset.pattern.permute.xlu0 1
    %298 = vperm.xlu0 %297, %v39
    %v299 = vpop.permute.xlu0 %298
    %301 = vset.pattern.permute.xlu0 1
    %302 = vperm.xlu0 %301, %v40
    %v303 = vpop.permute.xlu0 %302
    %305 = vset.pattern.permute.xlu0 1
    %306 = vperm.xlu0 %305, %v41
    %v307 = vpop.permute.xlu0 %306
    %309 = vset.pattern.permute.xlu0 1
    %310 = vperm.xlu0 %309, %v42
    %v311 = vpop.permute.xlu0 %310
    %313 = vset.pattern.permute.xlu0 1
    %314 = vperm.xlu0 %313, %v43
    %v315 = vpop.permute.xlu0 %314
    %317 = vset.pattern.permute.xlu0 1
    %318 = vperm.xlu0 %317, %v44
    %v319 = vpop.permute.xlu0 %318
    %321 = vset.pattern.permute.xlu0 1
    %322 = vperm.xlu0 %321, %v45
    %v323 = vpop.permute.xlu0 %322
    %325 = vset.pattern.permute.xlu0 1
    %326 = vperm.xlu0 %325, %v46
    %v327 = vpop.permute.xlu0 %326
    %329 = vset.pattern.permute.xlu0 1
    %330 = vperm.xlu0 %329, %v47
    %v331 = vpop.permute.xlu0 %330
    %333 = vset.pattern.permute.xlu0 1
    %334 = vperm.xlu0 %333, %v48
    %v335 = vpop.permute.xlu0 %334
    %337 = vset.pattern.permute.xlu0 1
    %338 = vperm.xlu0 %337, %v49
    %v339 = vpop.permute.xlu0 %338
    %341 = vset.pattern.permute.xlu0 1
    %342 = vperm.xlu0 %341, %v50
    %v343 = vpop.permute.xlu0 %342
    %345 = vset.pattern.permute.xlu0 1
    %346 = vperm.xlu0 %345, %v51
    %v347 = vpop.permute.xlu0 %346
    %349 = vset.pattern.permute.xlu0 1
    %350 = vperm.xlu0 %349, %v52
    %v351 = vpop.permute.xlu0 %350
    %353 = vset.pattern.permute.xlu0 1
    %354 = vperm.xlu0 %353, %v53
    %v355 = vpop.permute.xlu0 %354
    %357 = vset.pattern.permute.xlu0 1
    %358 = vperm.xlu0 %357, %v54
    %v359 = vpop.permute.xlu0 %358
    %361 = vset.pattern.permute.xlu0 1
    %362 = vperm.xlu0 %361, %v55
    %v363 = vpop.permute.xlu0 %362
    %365 = vset.pattern.permute.xlu0 1
    %366 = vperm.xlu0 %365, %v56
    %v367 = vpop.permute.xlu0 %366
    %369 = vset.pattern.permute.xlu0 1
    %370 = vperm.xlu0 %369, %v57
    %v371 = vpop.permute.xlu0 %370
    %373 = vset.pattern.permute.xlu0 1
    %374 = vperm.xlu0 %373, %v58
    %v375 = vpop.permute.xlu0 %374
    %377 = vset.pattern.permute.xlu0 1
    %378 = vperm.xlu0 %377, %v59
    %v379 = vpop.permute.xlu0 %378
    %381 = vset.pattern.permute.xlu0 1
    %382 = vperm.xlu0 %381, %v60
    %v383 = vpop.permute.xlu0 %382
    %v385 = vlaneseq
    %v386 = vshrl.u32 %v385, 7
    %v387 = vsub.s32 1, %v386
    %v388 = vrot.slane %v28, %v387
    %v389 = vmul.f32 %v259, %v388
    %v390 = vmul.f32 %v263, %v388
    %v391 = vmul.f32 %v267, %v388
    %v392 = vmul.f32 %v271, %v388
    %v393 = vmul.f32 %v275, %v388
    %v394 = vmul.f32 %v279, %v388
    %v395 = vmul.f32 %v283, %v388
    %v396 = vmul.f32 %v287, %v388
    %v397 = vmul.f32 %v291, %v388
    %v398 = vmul.f32 %v295, %v388
    %v399 = vmul.f32 %v299, %v388
    %v400 = vmul.f32 %v303, %v388
    %v401 = vmul.f32 %v307, %v388
    %v402 = vmul.f32 %v311, %v388
    %v403 = vmul.f32 %v315, %v388
    %v404 = vmul.f32 %v319, %v388
    %v405 = vmul.f32 %v323, %v388
    %v406 = vmul.f32 %v327, %v388
    %v407 = vmul.f32 %v331, %v388
    %v408 = vmul.f32 %v335, %v388
    %v409 = vmul.f32 %v339, %v388
    %v410 = vmul.f32 %v343, %v388
    %v411 = vmul.f32 %v347, %v388
    %v412 = vmul.f32 %v351, %v388
    %v413 = vmul.f32 %v355, %v388
    %v414 = vmul.f32 %v359, %v388
    %v415 = vmul.f32 %v363, %v388
    %v416 = vmul.f32 %v367, %v388
    %v417 = vmul.f32 %v371, %v388
    %v418 = vmul.f32 %v375, %v388
    %v419 = vmul.f32 %v379, %v388
    %v420 = vmul.f32 %v383, %v388
    %v421 = vadd.f32 %v225, %v389
    %v422 = vadd.f32 %v226, %v390
    %v423 = vadd.f32 %v227, %v391
    %v424 = vadd.f32 %v228, %v392
    %v425 = vadd.f32 %v229, %v393
    %v426 = vadd.f32 %v230, %v394
    %v427 = vadd.f32 %v231, %v395
    %v428 = vadd.f32 %v232, %v396
    %v429 = vadd.f32 %v233, %v397
    %v430 = vadd.f32 %v234, %v398
    %v431 = vadd.f32 %v235, %v399
    %v432 = vadd.f32 %v236, %v400
    %v433 = vadd.f32 %v237, %v401
    %v434 = vadd.f32 %v238, %v402
    %v435 = vadd.f32 %v239, %v403
    %v436 = vadd.f32 %v240, %v404
    %v437 = vadd.f32 %v241, %v405
    %v438 = vadd.f32 %v242, %v406
    %v439 = vadd.f32 %v243, %v407
    %v440 = vadd.f32 %v244, %v408
    %v441 = vadd.f32 %v245, %v409
    %v442 = vadd.f32 %v246, %v410
    %v443 = vadd.f32 %v247, %v411
    %v444 = vadd.f32 %v248, %v412
    %v445 = vadd.f32 %v249, %v413
    %v446 = vadd.f32 %v250, %v414
    %v447 = vadd.f32 %v251, %v415
    %v448 = vadd.f32 %v252, %v416
    %v449 = vadd.f32 %v253, %v417
    %v450 = vadd.f32 %v254, %v418
    %v451 = vadd.f32 %v255, %v419
    %v452 = vadd.f32 %v256, %v420
    %v453 = vld [vmem:[%s2] sm:$0xff]
    %v454 = vld [vmem:[%s2 + $0x8] sm:$0xff]
    %v455 = vld [vmem:[%s2 + $0x10] sm:$0xff]
    %v456 = vld [vmem:[%s2 + $0x18] sm:$0xff]
    %v457 = vld [vmem:[%s2 + $0x20] sm:$0xff]
    %v458 = vld [vmem:[%s2 + $0x28] sm:$0xff]
    %v459 = vld [vmem:[%s2 + $0x30] sm:$0xff]
    %v460 = vld [vmem:[%s2 + $0x38] sm:$0xff]
    %v461 = vld [vmem:[%s2 + $0x40] sm:$0xff]
    %v462 = vld [vmem:[%s2 + $0x48] sm:$0xff]
    %v463 = vld [vmem:[%s2 + $0x50] sm:$0xff]
    %v464 = vld [vmem:[%s2 + $0x58] sm:$0xff]
    %v465 = vld [vmem:[%s2 + $0x60] sm:$0xff]
    %v466 = vld [vmem:[%s2 + $0x68] sm:$0xff]
    %v467 = vld [vmem:[%s2 + $0x70] sm:$0xff]
    %v468 = vld [vmem:[%s2 + $0x78] sm:$0xff]
    %v469 = vld [vmem:[%s2 + $0x80] sm:$0xff]
    %v470 = vld [vmem:[%s2 + $0x88] sm:$0xff]
    %v471 = vld [vmem:[%s2 + $0x90] sm:$0xff]
    %v472 = vld [vmem:[%s2 + $0x98] sm:$0xff]
    %v473 = vld [vmem:[%s2 + $0xa0] sm:$0xff]
    %v474 = vld [vmem:[%s2 + $0xa8] sm:$0xff]
    %v475 = vld [vmem:[%s2 + $0xb0] sm:$0xff]
    %v476 = vld [vmem:[%s2 + $0xb8] sm:$0xff]
    %v477 = vld [vmem:[%s2 + $0xc0] sm:$0xff]
    %v478 = vld [vmem:[%s2 + $0xc8] sm:$0xff]
    %v479 = vld [vmem:[%s2 + $0xd0] sm:$0xff]
    %v480 = vld [vmem:[%s2 + $0xd8] sm:$0xff]
    %v481 = vld [vmem:[%s2 + $0xe0] sm:$0xff]
    %v482 = vld [vmem:[%s2 + $0xe8] sm:$0xff]
    %v483 = vld [vmem:[%s2 + $0xf0] sm:$0xff]
    %v484 = vld [vmem:[%s2 + $0xf8] sm:$0xff]
    %486 = vset.pattern.permute.xlu0 0
    %487 = vperm.xlu0 %486, %v453
    %v488 = vpop.permute.xlu0 %487
    %491 = vset.pattern.permute.xlu0 0
    %492 = vperm.xlu0 %491, %v454
    %v493 = vpop.permute.xlu0 %492
    %496 = vset.pattern.permute.xlu0 0
    %497 = vperm.xlu0 %496, %v455
    %v498 = vpop.permute.xlu0 %497
    %501 = vset.pattern.permute.xlu0 0
    %502 = vperm.xlu0 %501, %v456
    %v503 = vpop.permute.xlu0 %502
    %506 = vset.pattern.permute.xlu0 0
    %507 = vperm.xlu0 %506, %v457
    %v508 = vpop.permute.xlu0 %507
    %511 = vset.pattern.permute.xlu0 0
    %512 = vperm.xlu0 %511, %v458
    %v513 = vpop.permute.xlu0 %512
    %516 = vset.pattern.permute.xlu0 0
    %517 = vperm.xlu0 %516, %v459
    %v518 = vpop.permute.xlu0 %517
    %521 = vset.pattern.permute.xlu0 0
    %522 = vperm.xlu0 %521, %v460
    %v523 = vpop.permute.xlu0 %522
    %526 = vset.pattern.permute.xlu0 0
    %527 = vperm.xlu0 %526, %v461
    %v528 = vpop.permute.xlu0 %527
    %531 = vset.pattern.permute.xlu0 0
    %532 = vperm.xlu0 %531, %v462
    %v533 = vpop.permute.xlu0 %532
    %536 = vset.pattern.permute.xlu0 0
    %537 = vperm.xlu0 %536, %v463
    %v538 = vpop.permute.xlu0 %537
    %541 = vset.pattern.permute.xlu0 0
    %542 = vperm.xlu0 %541, %v464
    %v543 = vpop.permute.xlu0 %542
    %546 = vset.pattern.permute.xlu0 0
    %547 = vperm.xlu0 %546, %v465
    %v548 = vpop.permute.xlu0 %547
    %551 = vset.pattern.permute.xlu0 0
    %552 = vperm.xlu0 %551, %v466
    %v553 = vpop.permute.xlu0 %552
    %556 = vset.pattern.permute.xlu0 0
    %557 = vperm.xlu0 %556, %v467
    %v558 = vpop.permute.xlu0 %557
    %561 = vset.pattern.permute.xlu0 0
    %562 = vperm.xlu0 %561, %v468
    %v563 = vpop.permute.xlu0 %562
    %566 = vset.pattern.permute.xlu0 0
    %567 = vperm.xlu0 %566, %v469
    %v568 = vpop.permute.xlu0 %567
    %571 = vset.pattern.permute.xlu0 0
    %572 = vperm.xlu0 %571, %v470
    %v573 = vpop.permute.xlu0 %572
    %576 = vset.pattern.permute.xlu0 0
    %577 = vperm.xlu0 %576, %v471
    %v578 = vpop.permute.xlu0 %577
    %581 = vset.pattern.permute.xlu0 0
    %582 = vperm.xlu0 %581, %v472
    %v583 = vpop.permute.xlu0 %582
    %586 = vset.pattern.permute.xlu0 0
    %587 = vperm.xlu0 %586, %v473
    %v588 = vpop.permute.xlu0 %587
    %591 = vset.pattern.permute.xlu0 0
    %592 = vperm.xlu0 %591, %v474
    %v593 = vpop.permute.xlu0 %592
    %596 = vset.pattern.permute.xlu0 0
    %597 = vperm.xlu0 %596, %v475
    %v598 = vpop.permute.xlu0 %597
    %601 = vset.pattern.permute.xlu0 0
    %602 = vperm.xlu0 %601, %v476
    %v603 = vpop.permute.xlu0 %602
    %606 = vset.pattern.permute.xlu0 0
    %607 = vperm.xlu0 %606, %v477
    %v608 = vpop.permute.xlu0 %607
    %611 = vset.pattern.permute.xlu0 0
    %612 = vperm.xlu0 %611, %v478
    %v613 = vpop.permute.xlu0 %612
    %616 = vset.pattern.permute.xlu0 0
    %617 = vperm.xlu0 %616, %v479
    %v618 = vpop.permute.xlu0 %617
    %621 = vset.pattern.permute.xlu0 0
    %622 = vperm.xlu0 %621, %v480
    %v623 = vpop.permute.xlu0 %622
    %626 = vset.pattern.permute.xlu0 0
    %627 = vperm.xlu0 %626, %v481
    %v628 = vpop.permute.xlu0 %627
    %631 = vset.pattern.permute.xlu0 0
    %632 = vperm.xlu0 %631, %v482
    %v633 = vpop.permute.xlu0 %632
    %636 = vset.pattern.permute.xlu0 0
    %637 = vperm.xlu0 %636, %v483
    %v638 = vpop.permute.xlu0 %637
    %641 = vset.pattern.permute.xlu0 0
    %642 = vperm.xlu0 %641, %v484
    %v643 = vpop.permute.xlu0 %642
    %v645 = vadd.f32 %v421, %v488
    %v646 = vadd.f32 %v422, %v493
    %v647 = vadd.f32 %v423, %v498
    %v648 = vadd.f32 %v424, %v503
    %v649 = vadd.f32 %v425, %v508
    %v650 = vadd.f32 %v426, %v513
    %v651 = vadd.f32 %v427, %v518
    %v652 = vadd.f32 %v428, %v523
    %v653 = vadd.f32 %v429, %v528
    %v654 = vadd.f32 %v430, %v533
    %v655 = vadd.f32 %v431, %v538
    %v656 = vadd.f32 %v432, %v543
    %v657 = vadd.f32 %v433, %v548
    %v658 = vadd.f32 %v434, %v553
    %v659 = vadd.f32 %v435, %v558
    %v660 = vadd.f32 %v436, %v563
    %v661 = vadd.f32 %v437, %v568
    %v662 = vadd.f32 %v438, %v573
    %v663 = vadd.f32 %v439, %v578
    %v664 = vadd.f32 %v440, %v583
    %v665 = vadd.f32 %v441, %v588
    %v666 = vadd.f32 %v442, %v593
    %v667 = vadd.f32 %v443, %v598
    %v668 = vadd.f32 %v444, %v603
    %v669 = vadd.f32 %v445, %v608
    %v670 = vadd.f32 %v446, %v613
    %v671 = vadd.f32 %v447, %v618
    %v672 = vadd.f32 %v448, %v623
    %v673 = vadd.f32 %v449, %v628
    %v674 = vadd.f32 %v450, %v633
    %v675 = vadd.f32 %v451, %v638
    %v676 = vadd.f32 %v452, %v643
    %v677 = vmax.f32 %v645, 0.0
    %v678 = vmax.f32 %v646, 0.0
    %v679 = vmax.f32 %v647, 0.0
    %v680 = vmax.f32 %v648, 0.0
    %v681 = vmax.f32 %v649, 0.0
    %v682 = vmax.f32 %v650, 0.0
    %v683 = vmax.f32 %v651, 0.0
    %v684 = vmax.f32 %v652, 0.0
    %v685 = vmax.f32 %v653, 0.0
    %v686 = vmax.f32 %v654, 0.0
    %v687 = vmax.f32 %v655, 0.0
    %v688 = vmax.f32 %v656, 0.0
    %v689 = vmax.f32 %v657, 0.0
    %v690 = vmax.f32 %v658, 0.0
    %v691 = vmax.f32 %v659, 0.0
    %v692 = vmax.f32 %v660, 0.0
    %v693 = vmax.f32 %v661, 0.0
    %v694 = vmax.f32 %v662, 0.0
    %v695 = vmax.f32 %v663, 0.0
    %v696 = vmax.f32 %v664, 0.0
    %v697 = vmax.f32 %v665, 0.0
    %v698 = vmax.f32 %v666, 0.0
    %v699 = vmax.f32 %v667, 0.0
    %v700 = vmax.f32 %v668, 0.0
    %v701 = vmax.f32 %v669, 0.0
    %v702 = vmax.f32 %v670, 0.0
    %v703 = vmax.f32 %v671, 0.0
    %v704 = vmax.f32 %v672, 0.0
    %v705 = vmax.f32 %v673, 0.0
    %v706 = vmax.f32 %v674, 0.0
    %v707 = vmax.f32 %v675, 0.0
    %v708 = vmax.f32 %v676, 0.0
    %v709 = vld [vmem:[%s3] sm:$0xff]
    %v710 = vld [vmem:[%s3 + $0x8] sm:$0xff]
    %v711 = vld [vmem:[%s3 + $0x10] sm:$0xff]
    %v712 = vld [vmem:[%s3 + $0x18] sm:$0xff]
    %v713 = vld [vmem:[%s3 + $0x20] sm:$0xff]
    %v714 = vld [vmem:[%s3 + $0x28] sm:$0xff]
    %v715 = vld [vmem:[%s3 + $0x30] sm:$0xff]
    %v716 = vld [vmem:[%s3 + $0x38] sm:$0xff]
    %v717 = vld [vmem:[%s3 + $0x40] sm:$0xff]
    %v718 = vld [vmem:[%s3 + $0x48] sm:$0xff]
    %v719 = vld [vmem:[%s3 + $0x50] sm:$0xff]
    %v720 = vld [vmem:[%s3 + $0x58] sm:$0xff]
    %v721 = vld [vmem:[%s3 + $0x60] sm:$0xff]
    %v722 = vld [vmem:[%s3 + $0x68] sm:$0xff]
    %v723 = vld [vmem:[%s3 + $0x70] sm:$0xff]
    %v724 = vld [vmem:[%s3 + $0x78] sm:$0xff]
    %v725 = vpack.c.bf16 %v678, %v677
    %v726 = vpack.c.bf16 %v680, %v679
    %v727 = vpack.c.bf16 %v682, %v681
    %v728 = vpack.c.bf16 %v684, %v683
    %v729 = vpack.c.bf16 %v686, %v685
    %v730 = vpack.c.bf16 %v688, %v687
    %v731 = vpack.c.bf16 %v690, %v689
    %v732 = vpack.c.bf16 %v692, %v691
    %v733 = vpack.c.bf16 %v694, %v693
    %v734 = vpack.c.bf16 %v696, %v695
    %v735 = vpack.c.bf16 %v698, %v697
    %v736 = vpack.c.bf16 %v700, %v699
    %v737 = vpack.c.bf16 %v702, %v701
    %v738 = vpack.c.bf16 %v704, %v703
    %v739 = vpack.c.bf16 %v706, %v705
    %v740 = vpack.c.bf16 %v708, %v707
    %v741 = vld [vmem:[%s4] sm:$0xff]
    %v742 = vld [vmem:[%s4 + $0x8] sm:$0xff]
    %v743 = vld [vmem:[%s4 + $0x10] sm:$0xff]
    %v744 = vld [vmem:[%s4 + $0x18] sm:$0xff]
    %v745 = vld [vmem:[%s4 + $0x20] sm:$0xff]
    %v746 = vld [vmem:[%s4 + $0x28] sm:$0xff]
    %v747 = vld [vmem:[%s4 + $0x30] sm:$0xff]
    %v748 = vld [vmem:[%s4 + $0x38] sm:$0xff]
    %v749 = vld [vmem:[%s4 + $0x40] sm:$0xff]
    %v750 = vld [vmem:[%s4 + $0x48] sm:$0xff]
    %v751 = vld [vmem:[%s4 + $0x50] sm:$0xff]
    %v752 = vld [vmem:[%s4 + $0x58] sm:$0xff]
    %v753 = vld [vmem:[%s4 + $0x60] sm:$0xff]
    %v754 = vld [vmem:[%s4 + $0x68] sm:$0xff]
    %v755 = vld [vmem:[%s4 + $0x70] sm:$0xff]
    %v756 = vld [vmem:[%s4 + $0x78] sm:$0xff]
    %758 = vset.pattern.permute.xlu0 0
    %759 = vperm.xlu0 %758, %v741
    %v760 = vpop.permute.xlu0 %759
    %763 = vset.pattern.permute.xlu0 0
    %764 = vperm.xlu0 %763, %v742
    %v765 = vpop.permute.xlu0 %764
    %768 = vset.pattern.permute.xlu0 0
    %769 = vperm.xlu0 %768, %v743
    %v770 = vpop.permute.xlu0 %769
    %773 = vset.pattern.permute.xlu0 0
    %774 = vperm.xlu0 %773, %v744
    %v775 = vpop.permute.xlu0 %774
    %778 = vset.pattern.permute.xlu0 0
    %779 = vperm.xlu0 %778, %v745
    %v780 = vpop.permute.xlu0 %779
    %783 = vset.pattern.permute.xlu0 0
    %784 = vperm.xlu0 %783, %v746
    %v785 = vpop.permute.xlu0 %784
    %788 = vset.pattern.permute.xlu0 0
    %789 = vperm.xlu0 %788, %v747
    %v790 = vpop.permute.xlu0 %789
    %793 = vset.pattern.permute.xlu0 0
    %794 = vperm.xlu0 %793, %v748
    %v795 = vpop.permute.xlu0 %794
    %798 = vset.pattern.permute.xlu0 0
    %799 = vperm.xlu0 %798, %v749
    %v800 = vpop.permute.xlu0 %799
    %803 = vset.pattern.permute.xlu0 0
    %804 = vperm.xlu0 %803, %v750
    %v805 = vpop.permute.xlu0 %804
    %808 = vset.pattern.permute.xlu0 0
    %809 = vperm.xlu0 %808, %v751
    %v810 = vpop.permute.xlu0 %809
    %813 = vset.pattern.permute.xlu0 0
    %814 = vperm.xlu0 %813, %v752
    %v815 = vpop.permute.xlu0 %814
    %818 = vset.pattern.permute.xlu0 0
    %819 = vperm.xlu0 %818, %v753
    %v820 = vpop.permute.xlu0 %819
    %823 = vset.pattern.permute.xlu0 0
    %824 = vperm.xlu0 %823, %v754
    %v825 = vpop.permute.xlu0 %824
    %828 = vset.pattern.permute.xlu0 0
    %829 = vperm.xlu0 %828, %v755
    %v830 = vpop.permute.xlu0 %829
    %833 = vset.pattern.permute.xlu0 0
    %834 = vperm.xlu0 %833, %v756
    %v835 = vpop.permute.xlu0 %834
    %v853 = vunpack.c.l.b16 %v709
    %v854 = vunpack.c.h.b16 %v709
    %v855 = vunpack.c.l.b16 %v710
    %v856 = vunpack.c.h.b16 %v710
    %v857 = vunpack.c.l.b16 %v711
    %v858 = vunpack.c.h.b16 %v711
    %v859 = vunpack.c.l.b16 %v712
    %v860 = vunpack.c.h.b16 %v712
    %v861 = vunpack.c.l.b16 %v713
    %v862 = vunpack.c.h.b16 %v713
    %v863 = vunpack.c.l.b16 %v714
    %v864 = vunpack.c.h.b16 %v714
    %v865 = vunpack.c.l.b16 %v715
    %v866 = vunpack.c.h.b16 %v715
    %v867 = vunpack.c.l.b16 %v716
    %v868 = vunpack.c.h.b16 %v716
    %v869 = vunpack.c.l.b16 %v717
    %v870 = vunpack.c.h.b16 %v717
    %v871 = vunpack.c.l.b16 %v718
    %v872 = vunpack.c.h.b16 %v718
    %v873 = vunpack.c.l.b16 %v719
    %v874 = vunpack.c.h.b16 %v719
    %v875 = vunpack.c.l.b16 %v720
    %v876 = vunpack.c.h.b16 %v720
    %v877 = vunpack.c.l.b16 %v721
    %v878 = vunpack.c.h.b16 %v721
    %v879 = vunpack.c.l.b16 %v722
    %v880 = vunpack.c.h.b16 %v722
    %v881 = vunpack.c.l.b16 %v723
    %v882 = vunpack.c.h.b16 %v723
    %v883 = vunpack.c.l.b16 %v724
    %v884 = vunpack.c.h.b16 %v724
    %v885 = vpack.c.b16 %v855, %v853
    %v886 = vpack.c.b16 %v856, %v854
    %v887 = vpack.c.b16 %v859, %v857
    %v888 = vpack.c.b16 %v860, %v858
    %v889 = vpack.c.b16 %v863, %v861
    %v890 = vpack.c.b16 %v864, %v862
    %v891 = vpack.c.b16 %v867, %v865
    %v892 = vpack.c.b16 %v868, %v866
    %v893 = vpack.c.b16 %v871, %v869
    %v894 = vpack.c.b16 %v872, %v870
    %v895 = vpack.c.b16 %v875, %v873
    %v896 = vpack.c.b16 %v876, %v874
    %v897 = vpack.c.b16 %v879, %v877
    %v898 = vpack.c.b16 %v880, %v878
    %v899 = vpack.c.b16 %v883, %v881
    %v900 = vpack.c.b16 %v884, %v882
    %917 = vmatprep.subr.bf16.mxu0 0
    %918 = vmatpush1.bf16.msra.mxu0 %v732
    %919 = vmatprep.subr.bf16.mxu0 0
    %920 = vmatpush1.bf16.msra.mxu0 %v731
    %921 = vmatprep.subr.bf16.mxu0 0
    %922 = vmatpush1.bf16.msra.mxu0 %v730
    %923 = vmatprep.subr.bf16.mxu0 0
    %924 = vmatpush1.bf16.msra.mxu0 %v729
    %925 = vmatprep.subr.bf16.mxu0 0
    %926 = vmatpush1.bf16.msra.mxu0 %v728
    %927 = vmatprep.subr.bf16.mxu0 0
    %928 = vmatpush1.bf16.msra.mxu0 %v727
    %929 = vmatprep.subr.bf16.mxu0 0
    %930 = vmatpush1.bf16.msra.mxu0 %v726
    %931 = vmatprep.subr.bf16.mxu0 0
    %932 = vmatpush1.bf16.msra.mxu0 %v725
    %933 = vmatprep.subr.bf16.mxu0 0
    %934 = vmatpush2.bf16.msra.mxu0 %v740
    %935 = vmatprep.subr.bf16.mxu0 0
    %936 = vmatpush2.bf16.msra.mxu0 %v739
    %937 = vmatprep.subr.bf16.mxu0 0
    %938 = vmatpush2.bf16.msra.mxu0 %v738
    %939 = vmatprep.subr.bf16.mxu0 0
    %940 = vmatpush2.bf16.msra.mxu0 %v737
    %941 = vmatprep.subr.bf16.mxu0 0
    %942 = vmatpush2.bf16.msra.mxu0 %v736
    %943 = vmatprep.subr.bf16.mxu0 0
    %944 = vmatpush2.bf16.msra.mxu0 %v735
    %945 = vmatprep.subr.bf16.mxu0 0
    %946 = vmatpush2.bf16.msra.mxu0 %v734
    %947 = vmatprep.subr.bf16.mxu0 0
    %948 = vmatpush2.bf16.msra.mxu0 %v733
    %949 = vmatprep.mubr.bf16.mxu0 %v886
    %950 = vmatmul.mubr.bf16.gmra.mxu0 %v885
    %v951 = vpop.f32.mrf.mxu0
    %v952 = vadd.f32 %v760, %v951
    %v953 = vpop.f32.mrf.mxu0
    %v954 = vpop.f32.mrf.mxu0
    %v955 = vadd.f32 %v765, %v954
    %v956 = vpop.f32.mrf.mxu0
    %957 = vmatprep.mubr.bf16.mxu0 %v888
    %958 = vmatmul.mubr.bf16.gmra.mxu0 %v887
    %v959 = vpop.f32.mrf.mxu0
    %v960 = vadd.f32 %v770, %v959
    %v961 = vpop.f32.mrf.mxu0
    %v962 = vpop.f32.mrf.mxu0
    %v963 = vadd.f32 %v775, %v962
    %v964 = vpop.f32.mrf.mxu0
    %965 = vmatprep.mubr.bf16.mxu0 %v890
    %966 = vmatmul.mubr.bf16.gmra.mxu0 %v889
    %v967 = vpop.f32.mrf.mxu0
    %v968 = vadd.f32 %v780, %v967
    %v969 = vpop.f32.mrf.mxu0
    %v970 = vpop.f32.mrf.mxu0
    %v971 = vadd.f32 %v785, %v970
    %v972 = vpop.f32.mrf.mxu0
    %973 = vmatprep.mubr.bf16.mxu0 %v892
    %974 = vmatmul.mubr.bf16.gmra.mxu0 %v891
    %v975 = vpop.f32.mrf.mxu0
    %v976 = vadd.f32 %v790, %v975
    %v977 = vpop.f32.mrf.mxu0
    %v978 = vpop.f32.mrf.mxu0
    %v979 = vadd.f32 %v795, %v978
    %v980 = vpop.f32.mrf.mxu0
    %981 = vmatprep.mubr.bf16.mxu0 %v894
    %982 = vmatmul.mubr.bf16.gmra.mxu0 %v893
    %v983 = vpop.f32.mrf.mxu0
    %v984 = vadd.f32 %v800, %v983
    %v985 = vpop.f32.mrf.mxu0
    %v986 = vpop.f32.mrf.mxu0
    %v987 = vadd.f32 %v805, %v986
    %v988 = vpop.f32.mrf.mxu0
    %989 = vmatprep.mubr.bf16.mxu0 %v896
    %990 = vmatmul.mubr.bf16.gmra.mxu0 %v895
    %v991 = vpop.f32.mrf.mxu0
    %v992 = vadd.f32 %v810, %v991
    %v993 = vpop.f32.mrf.mxu0
    %v994 = vpop.f32.mrf.mxu0
    %v995 = vadd.f32 %v815, %v994
    %v996 = vpop.f32.mrf.mxu0
    %997 = vmatprep.mubr.bf16.mxu0 %v898
    %998 = vmatmul.mubr.bf16.gmra.mxu0 %v897
    %v999 = vpop.f32.mrf.mxu0
    %v1000 = vadd.f32 %v820, %v999
    %v1001 = vpop.f32.mrf.mxu0
    %v1002 = vpop.f32.mrf.mxu0
    %v1003 = vadd.f32 %v825, %v1002
    %v1004 = vpop.f32.mrf.mxu0
    %1005 = vmatprep.mubr.bf16.mxu0 %v900
    %1006 = vmatmul.mubr.bf16.gmra.mxu0 %v899
    %v1007 = vpop.f32.mrf.mxu0
    %v1008 = vadd.f32 %v830, %v1007
    %v1009 = vpop.f32.mrf.mxu0
    %v1010 = vpop.f32.mrf.mxu0
    %v1011 = vadd.f32 %v835, %v1010
    %v1012 = vpop.f32.mrf.mxu0
    %1013 = vdwg.mxu0
    %v1014 = vmax.f32 %v952, 0.0
    %v1015 = vmax.f32 %v955, 0.0
    %v1016 = vmax.f32 %v960, 0.0
    %v1017 = vmax.f32 %v963, 0.0
    %v1018 = vmax.f32 %v968, 0.0
    %v1019 = vmax.f32 %v971, 0.0
    %v1020 = vmax.f32 %v976, 0.0
    %v1021 = vmax.f32 %v979, 0.0
    %v1022 = vmax.f32 %v984, 0.0
    %v1023 = vmax.f32 %v987, 0.0
    %v1024 = vmax.f32 %v992, 0.0
    %v1025 = vmax.f32 %v995, 0.0
    %v1026 = vmax.f32 %v1000, 0.0
    %v1027 = vmax.f32 %v1003, 0.0
    %v1028 = vmax.f32 %v1008, 0.0
    %v1029 = vmax.f32 %v1011, 0.0
    %v1030 = vld [vmem:[%s5] sm:$0xf]
    %v1031 = vpack.c.bf16 %v1015, %v1014
    %v1032 = vpack.c.bf16 %v1017, %v1016
    %v1033 = vpack.c.bf16 %v1019, %v1018
    %v1034 = vpack.c.bf16 %v1021, %v1020
    %v1035 = vpack.c.bf16 %v1023, %v1022
    %v1036 = vpack.c.bf16 %v1025, %v1024
    %v1037 = vpack.c.bf16 %v1027, %v1026
    %v1038 = vpack.c.bf16 %v1029, %v1028
    %v1039 = vld [vmem:[%s6] sm:$0xff]
    %1041 = vset.pattern.permute.xlu0 0
    %1042 = vperm.xlu0 %1041, %v1039
    %v1043 = vpop.permute.xlu0 %1042
    %1045 = vmatprep.subr.bf16.mxu0 0
    %1046 = vmatpush1.bf16.msra.mxu0 %v1038
    %1047 = vmatprep.subr.bf16.mxu0 0
    %1048 = vmatpush1.bf16.msra.mxu0 %v1037
    %1049 = vmatprep.subr.bf16.mxu0 0
    %1050 = vmatpush1.bf16.msra.mxu0 %v1036
    %1051 = vmatprep.subr.bf16.mxu0 0
    %1052 = vmatpush1.bf16.msra.mxu0 %v1035
    %1053 = vmatprep.subr.bf16.mxu0 0
    %1054 = vmatpush1.bf16.msra.mxu0 %v1034
    %1055 = vmatprep.subr.bf16.mxu0 0
    %1056 = vmatpush1.bf16.msra.mxu0 %v1033
    %1057 = vmatprep.subr.bf16.mxu0 0
    %1058 = vmatpush1.bf16.msra.mxu0 %v1032
    %1059 = vmatprep.subr.bf16.mxu0 0
    %1060 = vmatpush1.bf16.msra.mxu0 %v1031
    %1061 = vmatprep.subr.bf16.mxu0 0
    %1062 = vmatpush2.bf16.msra.mxu0 0
    %1063 = vmatprep.subr.bf16.mxu0 0
    %1064 = vmatpush2.bf16.msra.mxu0 0
    %1065 = vmatprep.subr.bf16.mxu0 0
    %1066 = vmatpush2.bf16.msra.mxu0 0
    %1067 = vmatprep.subr.bf16.mxu0 0
    %1068 = vmatpush2.bf16.msra.mxu0 0
    %1069 = vmatprep.subr.bf16.mxu0 0
    %1070 = vmatpush2.bf16.msra.mxu0 0
    %1071 = vmatprep.subr.bf16.mxu0 0
    %1072 = vmatpush2.bf16.msra.mxu0 0
    %1073 = vmatprep.subr.bf16.mxu0 0
    %1074 = vmatpush2.bf16.msra.mxu0 0
    %1075 = vmatprep.subr.bf16.mxu0 0
    %1076 = vmatpush2.bf16.msra.mxu0 0
    %1077 = vmatprep.mubr.bf16.mxu0 0
    %1078 = vmatmul.mubr.bf16.gmra.mxu0 %v1030
    %v1079 = vpop.f32.mrf.mxu0
    %v1080 = vadd.f32 %v1043, %v1079
    %v1081 = vpop.f32.mrf.mxu0
    %v1082 = vpop.f32.mrf.mxu0
    %v1083 = vpop.f32.mrf.mxu0
    %1084 = vdwg.mxu0
    %v1085 = vrot.slane %v1080, 4
    %v1086 = vmax.f32 %v1080, %v1085
    %v1087 = vrot.slane %v1086, 2
    %v1088 = vmax.f32 %v1086, %v1087
    %v1089 = vrot.slane %v1088, 1
    %v1090 = vmax.f32 %v1088, %v1089
    %v1091 = vsub.f32 %v1080, %v1090
    %v1092 = vmul.f32 %v1091, 1.442695
    %v1093 = vpow.pop %v1092
    %v1094 = vrot.slane %v1093, 4
    %v1095 = vadd.f32 %v1093, %v1094
    %v1096 = vrot.slane %v1095, 2
    %v1097 = vadd.f32 %v1095, %v1096
    %v1098 = vrot.slane %v1097, 1
    %v1099 = vadd.f32 %v1097, %v1098
    %v1100 = vrcp.pop %v1099
    %v1101 = vmul.f32 1.0, %v1100
    %v1102 = vmul.f32 %v1093, %v1101
    %1103 = vst [vmem:[#allocation2] sm:$0xff] %v1102
    // Predicated region
    $region30: #{tpu_custom_call.1} parent=1 // pred_check
      _
    $region31: #{tpu_custom_call.1} parent=1 // pred_check_branch
      %1105 = sbr.rel (0) target = $region33
    $region32: #{tpu_custom_call.1} parent=1 // pred_region
      %s1107 = ssub.s32 128, 128
      %1108 = vsyncadd [#allocation3], %s1107
      %s1110 = sshll.u32 [#allocation2], 4
      %s1111 = int_to_ptr.vmem [resolvable:$true] %s1110
      %1113 = dma.vmem_to_hbm [thread:$0]  %s1111, 128, %s7, [#allocation3]
    $region33: #{tpu_custom_call.1} parent=1 // pred_fallthru
      _
    // Predicated region
    $region34: #{tpu_custom_call.1} parent=1 // pred_check
      _
    $region35: #{tpu_custom_call.1} parent=1 // pred_check_branch
      %1115 = sbr.rel (0) target = $region37
    $region36: #{tpu_custom_call.1} parent=1 // pred_region
      %1116 = dma.done [#allocation3], 128
    $region37: #{tpu_custom_call.1} parent=1 // pred_fallthru
      _
    %1117 = vsyncpa [#allocation3], 1

</llo_original>
